<compile_context>
chip_gen: v5e
topology: v5e:2x2
jax: 0.10.0
libtpu: 0.0.40
codegen_flags: <defaults>
</compile_context>

<pallas_src>
import functools

import jax
import jax.numpy as jnp
from jax import lax
from jax.experimental import pallas as pl
from jax.experimental.pallas import tpu as pltpu


def focal_loss_kernel(logits_ref, target_ref, alpha_ref, out_ref, acc_ref, *,
                      gamma, n_rows, block_n, tiles_per_core, inv_n):
    g = pl.program_id(0)           # core split (parallel axis)
    i = pl.program_id(1)           # tile within this core (reduction axis)

    @pl.when(i == 0)
    def _():
        acc_ref[...] = jnp.zeros_like(acc_ref)

    x = logits_ref[...].astype(jnp.float32)            # (BLOCK_N, C)
    tgt = target_ref[...]                               # (BLOCK_N, 1) int32
    alpha = alpha_ref[...].astype(jnp.float32)          # (1, C)

    # --- log-softmax pieces over the class axis (lanes) ---
    m = jnp.max(x, axis=-1, keepdims=True)               # (BLOCK_N, 1)
    z = x - m
    lse = jnp.log(jnp.sum(jnp.exp(z), axis=-1, keepdims=True))

    # --- fused one-hot gathers: target logit and target class weight ---
    # (no materialization of logp_all = z - lse over the full (BLOCK_N, C) tile)
    cls = lax.broadcasted_iota(jnp.int32, x.shape, 1)
    onehot = cls == tgt
    z_t = jnp.sum(jnp.where(onehot, z, 0.0), axis=-1, keepdims=True)
    w_t = jnp.sum(jnp.where(onehot, alpha, 0.0), axis=-1, keepdims=True)

    ce = -w_t * (z_t - lse)                # weighted CE, reduction='none'
    p = jnp.exp(-ce)
    focal = ((1.0 - p) ** gamma) * ce      # (BLOCK_N, 1)

    # --- mask tail rows of padded / redundant tiles (logical tile index) ---
    tile_idx = g * tiles_per_core + i
    row = lax.broadcasted_iota(jnp.int32, focal.shape, 0) + tile_idx * block_n
    focal = jnp.where(row < n_rows, focal, 0.0)

    acc_ref[...] += jnp.sum(focal, axis=0, keepdims=True)

    @pl.when(i == pl.num_programs(1) - 1)
    def _():
        # per-core partial of the mean, replicated over a lane-dense (8,128) tile
        out_ref[...] = jnp.broadcast_to(acc_ref[...] * inv_n, out_ref.shape)


def focal_loss(logits, targets, alpha, gamma=2, block_n=None):
    n, c = logits.shape
    targets2d = targets.reshape(n, 1).astype(jnp.int32)
    alpha2d = alpha.reshape(1, c).astype(jnp.float32)
    itemsize = jnp.dtype(logits.dtype).itemsize

    if block_n is None:
        c_lanes = pl.cdiv(c, 128) * 128
        # ~4 MiB per logits buffer -> ~8 MiB double-buffered (fits every gen).
        block_n = max(8, min(4 * 1024 * 1024 // (c_lanes * itemsize), 2048))
    block_n = max(8, (block_n // 8) * 8)
    block_n = min(block_n, pl.cdiv(n, 8) * 8)

    num_tiles = pl.cdiv(n, block_n)
    core_splits = 2 if num_tiles >= 2 else 1   # expose both TensorCores on v7x
    tiles_per_core = pl.cdiv(num_tiles, core_splits)

    def data_map(g, i):
        # Clamp: with an odd tile count the trailing redundant tile re-reads the
        # last valid tile; its rows are masked to zero inside the kernel.
        return (jnp.minimum(g * tiles_per_core + i, num_tiles - 1), 0)

    kernel = functools.partial(
        focal_loss_kernel, gamma=gamma, n_rows=n, block_n=block_n,
        tiles_per_core=tiles_per_core, inv_n=1.0 / n)

    cost = pl.CostEstimate(
        flops=int(10 * n * c),
        transcendentals=int(n * c + 2 * n),
        bytes_accessed=int(n * c * itemsize + n * 4 + c * 4
                           + core_splits * 8 * 128 * 4),
    )

    partials = pl.pallas_call(
        kernel,
        out_shape=jax.ShapeDtypeStruct((core_splits * 8, 128), jnp.float32),
        grid=(core_splits, tiles_per_core),
        in_specs=[
            pl.BlockSpec((block_n, c), data_map),      # logits, native dtype
            pl.BlockSpec((block_n, 1), data_map),      # targets
            pl.BlockSpec((1, c), lambda g, i: (0, 0)),  # alpha (resident)
        ],
        out_specs=pl.BlockSpec((8, 128), lambda g, i: (g, 0)),
        scratch_shapes=[pltpu.VMEM((1, 1), jnp.float32)],
        compiler_params=pltpu.CompilerParams(
            dimension_semantics=("parallel", "arbitrary")),
        cost_estimate=cost,
    )(logits, targets2d, alpha2d)

    # one replicated partial per core split -> sum of (partial_sum / n) = mean
    return jnp.sum(partials[0::8, 0])


def focal_loss_ref(logits, targets, alpha, gamma=2):
    # Pure-JAX reference of torch cross_entropy(weight=alpha, reduction='none')
    # followed by the focal modulation and mean.
    logp_all = jax.nn.log_softmax(logits.astype(jnp.float32), axis=-1)
    logp_t = jnp.take_along_axis(
        logp_all, targets[:, None].astype(jnp.int32), axis=-1)[:, 0]
    w_t = alpha.astype(jnp.float32)[targets]
    ce = -w_t * logp_t
    p = jnp.exp(-ce)
    return jnp.mean(((1.0 - p) ** gamma) * ce)


if __name__ == "__main__":
    key = jax.random.PRNGKey(0)

    def run_case(n, c, dtype, block_n=None, gamma=2):
        k1, k2 = jax.random.split(jax.random.fold_in(key, n * 1000 + c))
        logits = jax.random.normal(k1, (n, c), dtype=jnp.float32).astype(dtype)
        targets = jax.random.randint(k2, (n,), 0, c, dtype=jnp.int32)
        alpha = jnp.linspace(0.5, 1.5, c, dtype=jnp.float32)
        got = jax.block_until_ready(
            focal_loss(logits, targets, alpha, gamma=gamma, block_n=block_n))
        ref = focal_loss_ref(logits, targets, alpha, gamma=gamma)
        assert jnp.allclose(got, ref, rtol=1e-5, atol=1e-6), (n, c, dtype, got, ref)

    # small base case: single tile, single core split
    run_case(8, 16, jnp.float32)
    # multi-tile with partial tail tile + 2-way core split (even tile count)
    run_case(200, 16, jnp.float32, block_n=64)
    # bf16 streaming, non-128-aligned C, odd tile count (clamped redundant tile)
    run_case(200, 37, jnp.bfloat16, block_n=80)

    print("KERNEL_OK")
</pallas_src>

<mosaic_0001>
module attributes {stable_mosaic.version = 11 : i64} {
  func.func @focal_loss_kernel(%arg0: i32, %arg1: i32, %arg2: memref<8x16xf32, #tpu.memory_space<vmem>>, %arg3: memref<8x1xi32, #tpu.memory_space<vmem>>, %arg4: memref<1x16xf32, #tpu.memory_space<vmem>>, %arg5: memref<8x128xf32, #tpu.memory_space<vmem>>, %arg6: memref<1x1xf32, #tpu.memory_space<vmem>>) attributes {dimension_semantics = [#tpu.dimension_semantics<parallel>, #tpu.dimension_semantics<arbitrary>], iteration_bounds = array<i64: 1, 1>, scalar_prefetch = 0 : i64, scratch_operands = 1 : i64, tpu.core_type = #tpu.core_type<tc>, window_params = [{transform_indices = @transform_0, window_bounds = array<i64: 8, 16>}, {transform_indices = @transform_1, window_bounds = array<i64: 8, 1>}, {pipeline_mode = #tpu.pipeline_mode<synchronous>, transform_indices = @transform_2, window_bounds = array<i64: 1, 16>}, {transform_indices = @transform_3, window_bounds = array<i64: 8, 128>}]} {
    %c0_i32 = arith.constant 0 : i32
    %0 = arith.cmpi eq, %arg1, %c0_i32 : i32
    %1 = arith.extui %0 : i1 to i32
    %c0_i32_0 = arith.constant 0 : i32
    %2 = arith.cmpi ne, %1, %c0_i32_0 : i32
    scf.if %2 {
      %cst_23 = arith.constant 0.000000e+00 : f32
      %56 = vector.broadcast %cst_23 : f32 to vector<1x1xf32>
      %c0_24 = arith.constant 0 : index
      %c0_25 = arith.constant 0 : index
      %57 = vector.load %arg6[%c0_24, %c0_25] : memref<1x1xf32, #tpu.memory_space<vmem>>, vector<1x1xf32>
      tpu.vector_store %arg6[%c0_24, %c0_25], %56 {strides = array<i32>} : memref<1x1xf32, #tpu.memory_space<vmem>>, vector<1x1xf32>,
    } else {
    }
    %c0 = arith.constant 0 : index
    %c0_1 = arith.constant 0 : index
    %3 = vector.load %arg2[%c0, %c0_1] : memref<8x16xf32, #tpu.memory_space<vmem>>, vector<8x16xf32>
    %c0_2 = arith.constant 0 : index
    %c0_3 = arith.constant 0 : index
    %4 = vector.load %arg3[%c0_2, %c0_3] : memref<8x1xi32, #tpu.memory_space<vmem>>, vector<8x1xi32>
    %c0_4 = arith.constant 0 : index
    %c0_5 = arith.constant 0 : index
    %5 = vector.load %arg4[%c0_4, %c0_5] : memref<1x16xf32, #tpu.memory_space<vmem>>, vector<1x16xf32>
    %cst = arith.constant dense<0xFF800000> : vector<8xf32>
    %6 = vector.multi_reduction <maximumf>, %3, %cst [1] : vector<8x16xf32> to vector<8xf32>
    %7 = vector.shape_cast %6 : vector<8xf32> to vector<8x1xf32>
    %8 = vector.broadcast %7 : vector<8x1xf32> to vector<8x16xf32>
    %9 = arith.subf %3, %8 : vector<8x16xf32>
    %10 = math.exp %9 : vector<8x16xf32>
    %cst_6 = arith.constant dense<0.000000e+00> : vector<8xf32>
    %11 = vector.multi_reduction <add>, %10, %cst_6 [1] : vector<8x16xf32> to vector<8xf32>
    %12 = vector.shape_cast %11 : vector<8xf32> to vector<8x1xf32>
    %13 = math.log %12 : vector<8x1xf32>
    %14 = tpu.iota {dimensions = array<i32: 1>} : vector<8x16xi32>
    %15 = vector.broadcast %4 : vector<8x1xi32> to vector<8x16xi32>
    %16 = arith.cmpi eq, %14, %15 : vector<8x16xi32>
    %cst_7 = arith.constant 0.000000e+00 : f32
    %17 = vector.broadcast %cst_7 : f32 to vector<8x16xf32>
    %18 = arith.select %16, %9, %17 : vector<8x16xi1>, vector<8x16xf32>
    %cst_8 = arith.constant dense<0.000000e+00> : vector<8xf32>
    %19 = vector.multi_reduction <add>, %18, %cst_8 [1] : vector<8x16xf32> to vector<8xf32>
    %20 = vector.shape_cast %19 : vector<8xf32> to vector<8x1xf32>
    %cst_9 = arith.constant 0.000000e+00 : f32
    %21 = vector.shape_cast %5 : vector<1x16xf32> to vector<1x16xf32>
    %22 = vector.broadcast %21 : vector<1x16xf32> to vector<8x16xf32>
    %23 = vector.broadcast %cst_9 : f32 to vector<8x16xf32>
    %24 = arith.select %16, %22, %23 : vector<8x16xi1>, vector<8x16xf32>
    %cst_10 = arith.constant dense<0.000000e+00> : vector<8xf32>
    %25 = vector.multi_reduction <add>, %24, %cst_10 [1] : vector<8x16xf32> to vector<8xf32>
    %26 = vector.shape_cast %25 : vector<8xf32> to vector<8x1xf32>
    %cst_11 = arith.constant 0.000000e+00 : f32
    %27 = vector.broadcast %cst_11 : f32 to vector<8x1xf32>
    %28 = arith.subf %27, %26 : vector<8x1xf32>
    %29 = arith.subf %20, %13 : vector<8x1xf32>
    %30 = arith.mulf %28, %29 : vector<8x1xf32>
    %cst_12 = arith.constant 0.000000e+00 : f32
    %31 = vector.broadcast %cst_12 : f32 to vector<8x1xf32>
    %32 = arith.subf %31, %30 : vector<8x1xf32>
    %33 = math.exp %32 : vector<8x1xf32>
    %cst_13 = arith.constant 1.000000e+00 : f32
    %34 = vector.broadcast %cst_13 : f32 to vector<8x1xf32>
    %35 = arith.subf %34, %33 : vector<8x1xf32>
    %36 = arith.mulf %35, %35 : vector<8x1xf32>
    %37 = arith.mulf %36, %30 : vector<8x1xf32>
    %c1_i32 = arith.constant 1 : i32
    %38 = arith.muli %arg0, %c1_i32 : i32
    %39 = arith.addi %38, %arg1 : i32
    %40 = tpu.iota {dimensions = array<i32: 0>} : vector<8x1xi32>
    %c8_i32 = arith.constant 8 : i32
    %41 = arith.muli %39, %c8_i32 : i32
    %42 = vector.broadcast %41 : i32 to vector<8x1xi32>
    %43 = arith.addi %40, %42 : vector<8x1xi32>
    %c8_i32_14 = arith.constant 8 : i32
    %44 = vector.broadcast %c8_i32_14 : i32 to vector<8x1xi32>
    %45 = arith.cmpi slt, %43, %44 : vector<8x1xi32>
    %cst_15 = arith.constant 0.000000e+00 : f32
    %46 = vector.broadcast %cst_15 : f32 to vector<8x1xf32>
    %47 = arith.select %45, %37, %46 : vector<8x1xi1>, vector<8x1xf32>
    %c0_16 = arith.constant 0 : index
    %c0_17 = arith.constant 0 : index
    %48 = vector.load %arg6[%c0_16, %c0_17] : memref<1x1xf32, #tpu.memory_space<vmem>>, vector<1x1xf32>
    %cst_18 = arith.constant dense<0.000000e+00> : vector<1xf32>
    %49 = vector.multi_reduction <add>, %47, %cst_18 [0] : vector<8x1xf32> to vector<1xf32>
    %50 = vector.shape_cast %49 : vector<1xf32> to vector<1x1xf32>
    %51 = arith.addf %48, %50 : vector<1x1xf32>
    %c0_19 = arith.constant 0 : index
    %c0_20 = arith.constant 0 : index
    %52 = vector.load %arg6[%c0_19, %c0_20] : memref<1x1xf32, #tpu.memory_space<vmem>>, vector<1x1xf32>
    tpu.vector_store %arg6[%c0_19, %c0_20], %51 {strides = array<i32>} : memref<1x1xf32, #tpu.memory_space<vmem>>, vector<1x1xf32>,
    %c0_i32_21 = arith.constant 0 : i32
    %53 = arith.cmpi eq, %arg1, %c0_i32_21 : i32
    %54 = arith.extui %53 : i1 to i32
    %c0_i32_22 = arith.constant 0 : i32
    %55 = arith.cmpi ne, %54, %c0_i32_22 : i32
    scf.if %55 {
      %c0_23 = arith.constant 0 : index
      %c0_24 = arith.constant 0 : index
      %56 = vector.load %arg6[%c0_23, %c0_24] : memref<1x1xf32, #tpu.memory_space<vmem>>, vector<1x1xf32>
      %cst_25 = arith.constant 1.250000e-01 : f32
      %57 = vector.broadcast %cst_25 : f32 to vector<1x1xf32>
      %58 = arith.mulf %56, %57 : vector<1x1xf32>
      %59 = vector.shape_cast %58 : vector<1x1xf32> to vector<1x1xf32>
      %60 = vector.broadcast %59 : vector<1x1xf32> to vector<8x128xf32>
      %c0_26 = arith.constant 0 : index
      %c0_27 = arith.constant 0 : index
      %61 = vector.load %arg5[%c0_26, %c0_27] : memref<8x128xf32, #tpu.memory_space<vmem>>, vector<8x128xf32>
      tpu.vector_store %arg5[%c0_26, %c0_27], %60 {strides = array<i32>} : memref<8x128xf32, #tpu.memory_space<vmem>>, vector<8x128xf32>,
    } else {
    }
    return
  }
  func.func @transform_0(%arg0: i32, %arg1: i32) -> (i32, i32) {
    %c1_i32 = arith.constant 1 : i32
    %0 = arith.muli %arg0, %c1_i32 : i32
    %1 = arith.addi %0, %arg1 : i32
    %c0_i32 = arith.constant 0 : i32
    %2 = arith.minsi %1, %c0_i32 : i32
    %c0_i32_0 = arith.constant 0 : i32
    %c0_i32_1 = arith.constant 0 : i32
    return %2, %c0_i32_0 : i32, i32
  }
  func.func @transform_1(%arg0: i32, %arg1: i32) -> (i32, i32) {
    %c1_i32 = arith.constant 1 : i32
    %0 = arith.muli %arg0, %c1_i32 : i32
    %1 = arith.addi %0, %arg1 : i32
    %c0_i32 = arith.constant 0 : i32
    %2 = arith.minsi %1, %c0_i32 : i32
    %c0_i32_0 = arith.constant 0 : i32
    %c0_i32_1 = arith.constant 0 : i32
    return %2, %c0_i32_0 : i32, i32
  }
  func.func @transform_2(%arg0: i32, %arg1: i32) -> (i32, i32) {
    %c0_i32 = arith.constant 0 : i32
    %c0_i32_0 = arith.constant 0 : i32
    %c0_i32_1 = arith.constant 0 : i32
    return %c0_i32, %c0_i32_0 : i32, i32
  }
  func.func @transform_3(%arg0: i32, %arg1: i32) -> (i32, i32) {
    %c0_i32 = arith.constant 0 : i32
    %c0_i32_0 = arith.constant 0 : i32
    return %arg0, %c0_i32 : i32, i32
  }
}

</mosaic_0001>

<llo_original>
// kernel: tpu_custom_call.1
$region0: #{tpu_custom_call.1}
  #allocation0 [shape = 'u32[]', space=smem, size = 0x4, offset = 0x4, fixed_abs, tag = 'smem constant byte address 0x4 - core index']
  #allocation1 [shape = 'u32[72,128]{1,0:T(1,128)}', space=vmem, size = 0x9000, scoped, tag = 'internal scratch']
  #allocation2 [shape = 'f32[1,1]{1,0:T(1,128)}', space=vmem, size = 0x200, scoped, tag = 'scratch operand']
  %s0 = inlined_call_operand.vmem [shape: f32[8,16], index: 0, kind: input, shape index: {}]
  %s1 = inlined_call_operand.vmem [shape: s32[8,1], index: 1, kind: input, shape index: {}]
  %s2 = inlined_call_operand.vmem [shape: f32[1,16], index: 2, kind: input, shape index: {}]
  %s3 = inlined_call_operand.hbm [shape: f32[8,128], index: 3, kind: output, shape index: {}]
  %s4 = sld [smem:[#allocation0]]
  $region30: #{tpu_custom_call.1} parent=0
    _
  %s6 = ssub.s32 1, %s4
  %s7 = scalar_select 0, %s6, %s4
  $region1: #{tpu_custom_call.1} parent=0
    #allocation3 [shape = 'u8[4096]{0}', space=vmem, size = 0x1000, scoped, tag = 'output window, operand 0, single buffered']
    #allocation4 [shape = 's32[1]{0}', space=sflag, size = 0x4, scoped, tag = 'scoped memory for tpu_custom_call.1']
    %8 = vsyncpa [#allocation4], 0
    // Predicated region
    $region2: #{tpu_custom_call.1} parent=1 // pred_check
      _
    $region3: #{tpu_custom_call.1} parent=1 // pred_check_branch
      %10 = sbr.rel (0) target = $region5
    $region4: #{tpu_custom_call.1} parent=1 // pred_region
      %s11 = sadd.s32 0, 0
      %p12 = scmp.lt.s32.totalorder %s11, 0
      %s13 = scalar_select %p12, %s11, 0
      %p14 = scmp.lt.s32.totalorder %s13, 0
      %s15 = scalar_select %p14, %s13, 0
      %s16 = smul.addr %s15, 8
      %s17 = scalar_lea.vmem %s0, %s16
      %s18 = sadd.s32 0, 0
      %p19 = scmp.lt.s32.totalorder %s18, 0
      %s20 = scalar_select %p19, %s18, 0
    $region5: #{tpu_custom_call.1} parent=1 // pred_fallthru
      _
    // Predicated region
    $region6: #{tpu_custom_call.1} parent=1 // pred_check
      _
    $region7: #{tpu_custom_call.1} parent=1 // pred_check_branch
      %22 = sbr.rel (0) target = $region9
    $region8: #{tpu_custom_call.1} parent=1 // pred_region
      %s23 = sadd.s32 0, 0
      %p24 = scmp.lt.s32.totalorder %s23, 0
      %s25 = scalar_select %p24, %s23, 0
      %p26 = scmp.lt.s32.totalorder %s25, 0
      %s27 = scalar_select %p26, %s25, 0
      %s28 = smul.addr %s27, 8
      %s29 = scalar_lea.vmem %s1, %s28
      %s30 = sadd.s32 0, 0
      %p31 = scmp.lt.s32.totalorder %s30, 0
      %s32 = scalar_select %p31, %s30, 0
    $region9: #{tpu_custom_call.1} parent=1 // pred_fallthru
      _
    // Predicated region
    $region10: #{tpu_custom_call.1} parent=1 // pred_check
      _
    $region11: #{tpu_custom_call.1} parent=1 // pred_check_branch
      %34 = sbr.rel (0) target = $region13
    $region12: #{tpu_custom_call.1} parent=1 // pred_region
      _
    $region13: #{tpu_custom_call.1} parent=1 // pred_fallthru
      _
    %s35 = sadd.s32 0, 0
    %p36 = scmp.lt.s32.totalorder %s35, 0
    %s37 = scalar_select %p36, %s35, 0
    %p38 = scmp.lt.s32.totalorder %s37, 0
    %s39 = scalar_select %p38, %s37, 0
    %s40 = smul.addr %s39, 8
    %s41 = scalar_lea.vmem %s0, %s40
    %s42 = sadd.s32 0, 0
    %p43 = scmp.lt.s32.totalorder %s42, 0
    %s44 = scalar_select %p43, %s42, 0
    %p45 = scmp.lt.s32.totalorder %s44, 0
    %s46 = scalar_select %p45, %s44, 0
    %s47 = smul.addr %s46, 8
    %s48 = scalar_lea.vmem %s1, %s47
    %s49 = sadd.s32 0, 0
    %p50 = scmp.lt.s32.totalorder %s49, 0
    %s51 = scalar_select %p50, %s49, 0
    %p52 = scmp.lt.s32.totalorder %s51, 0
    %s53 = scalar_select %p52, %s51, 0
    %s54 = smul.addr %s53, 8
    %s55 = scalar_lea.vmem %s0, %s54
    %s56 = sadd.s32 0, 0
    %p57 = scmp.lt.s32.totalorder %s56, 0
    %s58 = scalar_select %p57, %s56, 0
    %s59 = sadd.s32 0, 0
    %p60 = scmp.lt.s32.totalorder %s59, 0
    %s61 = scalar_select %p60, %s59, 0
    %p62 = scmp.lt.s32.totalorder %s61, 0
    %s63 = scalar_select %p62, %s61, 0
    %s64 = smul.addr %s63, 8
    %s65 = scalar_lea.vmem %s1, %s64
    %s66 = sadd.s32 0, 0
    %p67 = scmp.lt.s32.totalorder %s66, 0
    %s68 = scalar_select %p67, %s66, 0
    %p69 = scmp.eq.s32.totalorder 0, 0
    // Predicated region
    $region14: #{tpu_custom_call.1} parent=1 // pred_check
      %p70 = pneg %p69
    $region15: #{tpu_custom_call.1} parent=1 // pred_check_branch
      %72 = sbr.rel (%p70) target = $region17
    $region16: #{tpu_custom_call.1} parent=1 // pred_region
      %vm73 = vcmask 0
      %74 = vst.msk [vmem:[#allocation2] sm:$0x1] %vm73, 0.0
    $region17: #{tpu_custom_call.1} parent=1 // pred_fallthru
      _
    %v75 = vld [vmem:[%s55] sm:$0xff]
    %v76 = vld [vmem:[%s65] sm:$0xff]
    %v77 = vld [vmem:[%s2] sm:$0x1]
    %vm78 = vcmask 130048
    %v79 = vsel %vm78, %v75, -inf
    %80 = vmax.xlane.f32.xlu0 %v79
    %v81 = vpop.xlane.xlu0 %80
    %v82 = vsub.f32 %v75, %v81
    %v83 = vmul.f32 %v82, 1.442695
    %v84 = vpow.pop %v83
    %v85 = vsel %vm78, %v84, 0.0
    %86 = vadd.xlane.f32.xlu0 %v85
    %v87 = vpop.xlane.xlu0 %86
    %v88 = vlog2.pop %v87
    %v89 = vmul.f32 %v88, 0.6931472
    %v90 = vlaneseq
    %v91 = vand.u32 %v90, 127
    %92 = vset.pattern.permute.xlu0 0
    %93 = vperm.xlu0 %92, %v76
    %v94 = vpop.permute.xlu0 %93
    %vm95 = vcmp.eq.s32.totalorder %v91, %v94
    %v96 = vsel %vm95, %v82, 0.0
    %v97 = vsel %vm78, %v96, 0.0
    %98 = vadd.xlane.f32.xlu0 %v97
    %v99 = vpop.xlane.xlu0 %98
    %v101 = vperm.slane %v77, 0
    %v103 = vsel %vm95, %v101, 0.0
    %v104 = vsel %vm78, %v103, 0.0
    %105 = vadd.xlane.f32.xlu0 %v104
    %v106 = vpop.xlane.xlu0 %105
    %v107 = vsub.f32 0.0, %v106
    %v108 = vsub.f32 %v99, %v89
    %v109 = vmul.f32 %v107, %v108
    %v110 = vsub.f32 0.0, %v109
    %v111 = vmul.f32 %v110, 1.442695
    %v112 = vpow.pop %v111
    %v113 = vsub.f32 1.0, %v112
    %v114 = vmul.f32 %v113, %v113
    %v115 = vmul.f32 %v114, %v109
    %s116 = sadd.s32 0, 0
    %v117 = vlaneseq
    %v118 = vshrl.u32 %v117, 7
    %s119 = smul.u32 %s116, 8
    %v120 = vstv %s119
    %v121 = vadd.s32 %v118, %v120
    %vm122 = vcmp.lt.s32.totalorder %v121, 8
    %v123 = vsel %vm122, %v115, 0.0
    %v124 = vld [vmem:[#allocation2] sm:$0x1]
    %v125 = vrot.slane %v123, 4
    %v126 = vadd.f32 %v123, %v125
    %v127 = vrot.slane %v126, 2
    %v128 = vadd.f32 %v126, %v127
    %v129 = vrot.slane %v128, 1
    %v130 = vadd.f32 %v128, %v129
    %v131 = vadd.f32 %v124, %v130
    %vm132 = vcmask 0
    %133 = vst.msk [vmem:[#allocation2] sm:$0x1] %vm132, %v131
    // Predicated region
    $region18: #{tpu_custom_call.1} parent=1 // pred_check
      %p134 = pneg %p69
    $region19: #{tpu_custom_call.1} parent=1 // pred_check_branch
      %136 = sbr.rel (%p134) target = $region21
    $region20: #{tpu_custom_call.1} parent=1 // pred_region
      %v137 = vld [vmem:[#allocation2] sm:$0x1]
      %v138 = vmul.f32 %v137, 0.125
      %v140 = vperm.slane %v138, 0
      %141 = vset.pattern.permute.xlu0 0
      %142 = vperm.xlu0 %141, %v140
      %v143 = vpop.permute.xlu0 %142
      %145 = vst [vmem:[#allocation3] sm:$0xff] %v143
    $region21: #{tpu_custom_call.1} parent=1 // pred_fallthru
      _
    // Predicated region
    $region22: #{tpu_custom_call.1} parent=1 // pred_check
      _
    $region23: #{tpu_custom_call.1} parent=1 // pred_check_branch
      %147 = sbr.rel (0) target = $region25
    $region24: #{tpu_custom_call.1} parent=1 // pred_region
      %149 = vsyncadd [#allocation4], 0
      %s151 = sshll.u32 [#allocation3], 4
      %s152 = int_to_ptr.vmem [resolvable:$true] %s151
      %s153 = sshll.u32 %s3, 4
      %s154 = int_to_ptr.hbm [resolvable:$true] %s153
      %156 = dma.vmem_to_hbm [thread:$0]  %s152, 128, %s154, [#allocation4]
    $region25: #{tpu_custom_call.1} parent=1 // pred_fallthru
      _
    // Predicated region
    $region26: #{tpu_custom_call.1} parent=1 // pred_check
      _
    $region27: #{tpu_custom_call.1} parent=1 // pred_check_branch
      %158 = sbr.rel (0) target = $region29
    $region28: #{tpu_custom_call.1} parent=1 // pred_region
      %160 = dma.done [#allocation4], 128
    $region29: #{tpu_custom_call.1} parent=1 // pred_fallthru
      _
    %161 = vsyncpa [#allocation4], 1

</llo_original>
